<compile_context>
chip_gen: v7x
topology: tpu7x:2x2x1
jax: 0.10.0
libtpu: 0.0.40
codegen_flags: <defaults>
</compile_context>

<pallas_src>
import functools

import jax
import jax.numpy as jnp
from jax.experimental import pallas as pl
from jax.experimental.pallas import tpu as pltpu


# ---------------------------------------------------------------------------
# Parameter preprocessing (run ONCE, outside the hot path)
# ---------------------------------------------------------------------------
def preprocess_params(params, *, compute_dtype=jnp.bfloat16):
    """Cast MXU weights to `compute_dtype` and reshape biases, once."""
    H = params["w_lin"].shape[0]
    return {
        "w_ada": params["w_ada"].astype(compute_dtype),                 # (H, 2H)
        "b_ada": params["b_ada"].reshape(1, 2 * H).astype(jnp.float32),  # (1, 2H)
        "w_lin": params["w_lin"].astype(compute_dtype),                 # (H, O)
        "b_lin": params["b_lin"].reshape(1, -1).astype(jnp.float32),     # (1, O)
    }


# ---------------------------------------------------------------------------
# Kernel 1: adaLN modulation  ->  (shift, 1 + scale) from one matmul
# ---------------------------------------------------------------------------
def _adaln_kernel(c_ref, w_ref, b_ref, shift_ref, oneps_ref):
    H = shift_ref.shape[-1]
    c = c_ref[...].astype(jnp.float32)
    s = (c * jax.nn.sigmoid(c)).astype(w_ref.dtype)          # SiLU -> bf16 for MXU
    y = jnp.dot(s, w_ref[...], preferred_element_type=jnp.float32) + b_ref[...]
    shift_ref[...] = y[:, :H]
    oneps_ref[...] = 1.0 + y[:, H:]                           # emit (1 + scale)


def adaln_modulation(c, w_ada_c, b_ada_c):
    """Returns (shift, 1 + scale), each (B, H) float32."""
    B, H = c.shape
    resident = pl.BlockSpec(memory_space=pltpu.MemorySpace.VMEM)
    return pl.pallas_call(
        _adaln_kernel,
        out_shape=(
            jax.ShapeDtypeStruct((B, H), jnp.float32),
            jax.ShapeDtypeStruct((B, H), jnp.float32),
        ),
        in_specs=[resident, resident, resident],
        out_specs=(resident, resident),
    )(c, w_ada_c, b_ada_c)


# ---------------------------------------------------------------------------
# Kernel 2: fused LayerNorm + modulate + final Linear
# ---------------------------------------------------------------------------
def _final_kernel(x_ref, shift_ref, oneps_ref, w_ref, b_ref, o_ref, *, eps, inv_h):
    bi = pl.program_id(1)                                     # batch index

    x = x_ref[0].astype(jnp.float32)                          # (tT, H), f32 stats
    # One-pass LayerNorm statistics: var = E[x^2] - E[x]^2 (f32, clamped >= 0).
    mean = jnp.sum(x, axis=-1, keepdims=True) * inv_h
    mean_sq = jnp.sum(x * x, axis=-1, keepdims=True) * inv_h
    var = jnp.maximum(mean_sq - mean * mean, 0.0)
    xn = (x - mean) * jax.lax.rsqrt(var + eps)                # LN, no affine

    shift = shift_ref[pl.ds(bi, 1), :]                        # (1, H) f32, resident
    oneps = oneps_ref[pl.ds(bi, 1), :]                        # (1, H) f32, = 1+scale
    mod = (xn * oneps + shift).astype(w_ref.dtype)            # bf16 MXU operand

    o_ref[0] = (
        jnp.dot(mod, w_ref[...], preferred_element_type=jnp.float32)
        + b_ref[...]                                          # (1, O) f32
    ).astype(o_ref.dtype)


def _vmem_capacity_bytes():
    try:
        return int(pltpu.get_tpu_info().vmem_capacity_bytes)
    except Exception:
        return 64 * 2 ** 20                 # conservative (v7x per-core VMEM)


def _pick_token_tile(T, H, O, x_itemsize, o_itemsize):
    cap_bytes = _vmem_capacity_bytes()
    # Allow larger tiles on 128 MiB chips (v5e/v6e); 1024 cap on v7x (64 MiB).
    cap = 2048 if cap_bytes >= 96 * 2 ** 20 else 1024
    # Keep the double-buffered x/out tiles within ~40% of physical VMEM.
    budget = int(0.4 * cap_bytes)
    per_row = 2 * H * x_itemsize + 2 * O * o_itemsize
    while cap > 8 and cap * per_row > budget:
        cap //= 2
    t = cap
    while t >= 8:
        if T % t == 0:
            return t
        t //= 2
    # No power-of-two divisor: ragged last tile; Pallas masks the remainder,
    # so pipelining and bounded VMEM are preserved for arbitrary T.
    return min(cap, max(8, ((T + 7) // 8) * 8))


def final_linear(x, shift, one_plus_scale, w_lin_c, b_lin_c, *, eps=1e-6):
    B, T, H = x.shape
    O = w_lin_c.shape[-1]
    out_dtype = x.dtype                      # bf16 in -> bf16 out (halved DMA)

    x_bytes = jnp.dtype(x.dtype).itemsize
    o_bytes = jnp.dtype(out_dtype).itemsize
    w_bytes = jnp.dtype(w_lin_c.dtype).itemsize
    tT = _pick_token_tile(T, H, O, x_bytes, o_bytes)
    nT = pl.cdiv(T, tT)

    # VMEM budget: double-buffered x / out tiles + single-buffered residents.
    est = (2 * tT * H * x_bytes
           + 2 * tT * O * o_bytes
           + H * O * w_bytes + O * 4
           + 2 * B * H * 4)
    vmem_limit = int(min(max(2 * est, 32 * 2 ** 20), 48 * 2 ** 20))  # v7x headroom

    resident = pl.BlockSpec(memory_space=pltpu.MemorySpace.VMEM)
    kernel = functools.partial(_final_kernel, eps=eps, inv_h=1.0 / H)
    return pl.pallas_call(
        kernel,
        out_shape=jax.ShapeDtypeStruct((B, T, O), out_dtype),
        grid=(nT, B),            # token axis first: v7x megacore splits big axis
        in_specs=[
            pl.BlockSpec((1, tT, H), lambda t, b: (b, t, 0)),   # pipelined x tile
            resident,            # shift      (B, H)  whole-array VMEM resident
            resident,            # 1 + scale  (B, H)
            resident,            # w_lin      (H, O)  single-buffered weight
            resident,            # b_lin      (1, O)
        ],
        out_specs=pl.BlockSpec((1, tT, O), lambda t, b: (b, t, 0)),
        compiler_params=pltpu.CompilerParams(
            dimension_semantics=("parallel", "parallel"),
            vmem_limit_bytes=vmem_limit,
        ),
    )(x, shift, one_plus_scale, w_lin_c, b_lin_c)


# ---------------------------------------------------------------------------
# FinalLayer forward (glue + Pallas kernels)
# ---------------------------------------------------------------------------
def final_layer_forward(x, c, prep, *, eps=1e-6):
    """x: (B, T, H) tokens (prefer bf16 at the call site), c: (B, H).
    `prep` is the output of `preprocess_params` (weights pre-cast, run once)."""
    shift, one_plus_scale = adaln_modulation(c, prep["w_ada"], prep["b_ada"])
    return final_linear(x, shift, one_plus_scale, prep["w_lin"], prep["b_lin"],
                        eps=eps)


def init_params(key, hidden_size, patch_size, out_channels):
    out_dim = patch_size * patch_size * out_channels
    k1, k2, k3, k4 = jax.random.split(key, 4)
    # Deterministic synthetic parameters (stored already transposed: (in, out)).
    return {
        "w_ada": jax.random.normal(k1, (hidden_size, 2 * hidden_size), jnp.float32) * 0.02,
        "b_ada": jax.random.normal(k2, (1, 2 * hidden_size), jnp.float32) * 0.02,
        "w_lin": jax.random.normal(k3, (hidden_size, out_dim), jnp.float32) * 0.02,
        "b_lin": jax.random.normal(k4, (1, out_dim), jnp.float32) * 0.02,
    }


# Pure-JAX reference. `compute_dtype` mirrors the kernel's MXU-operand casts.
def final_layer_reference(x, c, params, eps=1e-6, compute_dtype=jnp.float32):
    H = x.shape[-1]
    f32 = jnp.float32
    s = (c.astype(f32) * jax.nn.sigmoid(c.astype(f32))).astype(compute_dtype)
    wa = params["w_ada"].astype(compute_dtype)
    ba = params["b_ada"].astype(f32)
    shift = jnp.dot(s, wa[:, :H], preferred_element_type=f32) + ba[:, :H]
    scale = jnp.dot(s, wa[:, H:], preferred_element_type=f32) + ba[:, H:]
    xf = x.astype(f32)
    mean = jnp.mean(xf, axis=-1, keepdims=True)
    var = jnp.mean((xf - mean) ** 2, axis=-1, keepdims=True)
    xn = (xf - mean) * jax.lax.rsqrt(var + eps)
    mod = (xn * (1.0 + scale[:, None, :]) + shift[:, None, :]).astype(compute_dtype)
    return (jnp.dot(mod, params["w_lin"].astype(compute_dtype),
                    preferred_element_type=f32)
            + params["b_lin"].reshape(1, 1, -1).astype(f32))


if __name__ == "__main__":
    B, T, H = 2, 8, 32
    patch_size, out_channels = 2, 4

    key = jax.random.PRNGKey(0)
    kx, kc, kp = jax.random.split(key, 3)
    x = jax.random.normal(kx, (B, T, H), jnp.float32)
    c = jax.random.normal(kc, (B, H), jnp.float32)
    params = init_params(kp, H, patch_size, out_channels)
    prep = preprocess_params(params)            # one-time weight preprocessing

    out = final_layer_forward(x, c, prep)
    out = jax.block_until_ready(out)

    O = patch_size * patch_size * out_channels
    assert out.shape == (B, T, O), out.shape

    out_f32 = out.astype(jnp.float32)

    # Tight check against a reference using the same bf16 MXU-operand casts.
    ref_matched = final_layer_reference(x, c, params, compute_dtype=jnp.bfloat16)
    assert jnp.allclose(out_f32, ref_matched, atol=2e-3, rtol=2e-3), (
        float(jnp.max(jnp.abs(out_f32 - ref_matched))))

    # Sanity check against the full-f32 reference (bf16 rounding tolerance).
    ref_f32 = final_layer_reference(x, c, params, compute_dtype=jnp.float32)
    assert jnp.allclose(out_f32, ref_f32, atol=3e-2, rtol=3e-2), (
        float(jnp.max(jnp.abs(out_f32 - ref_f32))))

    print("KERNEL_OK")
</pallas_src>

<mosaic_0001>
module attributes {stable_mosaic.version = 11 : i64} {
  func.func @_adaln_kernel(%arg0: memref<2x32xf32, #tpu.memory_space<vmem>>, %arg1: memref<32x64xbf16, #tpu.memory_space<vmem>>, %arg2: memref<1x64xf32, #tpu.memory_space<vmem>>, %arg3: memref<2x32xf32, #tpu.memory_space<vmem>>, %arg4: memref<2x32xf32, #tpu.memory_space<vmem>>) attributes {dimension_semantics = [], scalar_prefetch = 0 : i64, scratch_operands = 0 : i64, tpu.core_type = #tpu.core_type<tc>} {
    %c0 = arith.constant 0 : index
    %c0_0 = arith.constant 0 : index
    %0 = vector.load %arg0[%c0, %c0_0] : memref<2x32xf32, #tpu.memory_space<vmem>>, vector<2x32xf32>
    %1 = arith.negf %0 : vector<2x32xf32>
    %2 = math.exp %1 : vector<2x32xf32>
    %cst = arith.constant 1.000000e+00 : f32
    %3 = vector.broadcast %cst : f32 to vector<2x32xf32>
    %4 = arith.addf %3, %2 : vector<2x32xf32>
    %5 = arith.divf %3, %4 : vector<2x32xf32>
    %6 = arith.mulf %0, %5 : vector<2x32xf32>
    %7 = arith.truncf %6 : vector<2x32xf32> to vector<2x32xbf16>
    %c0_1 = arith.constant 0 : index
    %c0_2 = arith.constant 0 : index
    %8 = vector.load %arg1[%c0_1, %c0_2] : memref<32x64xbf16, #tpu.memory_space<vmem>>, vector<32x64xbf16>
    %cst_3 = arith.constant dense<0.000000e+00> : vector<2x64xf32>
    %9 = tpu.matmul %7, %8, %cst_3 {dimension_numbers = #tpu.dot_dimension_numbers<[1], [0], [0], [1], [0, 0, 1, 1], [], []>} : vector<2x32xbf16>, vector<32x64xbf16>, vector<2x64xf32> -> vector<2x64xf32>
    %c0_4 = arith.constant 0 : index
    %c0_5 = arith.constant 0 : index
    %10 = vector.load %arg2[%c0_4, %c0_5] : memref<1x64xf32, #tpu.memory_space<vmem>>, vector<1x64xf32>
    %11 = vector.broadcast %10 : vector<1x64xf32> to vector<2x64xf32>
    %12 = arith.addf %9, %11 : vector<2x64xf32>
    %13 = vector.extract_strided_slice %12 {offsets = [0, 0], sizes = [2, 32], strides = [1, 1]} : vector<2x64xf32> to vector<2x32xf32>
    %c0_6 = arith.constant 0 : index
    %c0_7 = arith.constant 0 : index
    %14 = vector.load %arg3[%c0_6, %c0_7] : memref<2x32xf32, #tpu.memory_space<vmem>>, vector<2x32xf32>
    tpu.vector_store %arg3[%c0_6, %c0_7], %13 {strides = array<i32>} : memref<2x32xf32, #tpu.memory_space<vmem>>, vector<2x32xf32>,
    %15 = vector.extract_strided_slice %12 {offsets = [0, 32], sizes = [2, 32], strides = [1, 1]} : vector<2x64xf32> to vector<2x32xf32>
    %cst_8 = arith.constant 1.000000e+00 : f32
    %16 = vector.broadcast %cst_8 : f32 to vector<2x32xf32>
    %17 = arith.addf %16, %15 : vector<2x32xf32>
    %c0_9 = arith.constant 0 : index
    %c0_10 = arith.constant 0 : index
    %18 = vector.load %arg4[%c0_9, %c0_10] : memref<2x32xf32, #tpu.memory_space<vmem>>, vector<2x32xf32>
    tpu.vector_store %arg4[%c0_9, %c0_10], %17 {strides = array<i32>} : memref<2x32xf32, #tpu.memory_space<vmem>>, vector<2x32xf32>,
    return
  }
}

</mosaic_0001>

<llo_original>
// kernel: tpu_custom_call.1
$region0: #{tpu_custom_call.1}
  #allocation0 [shape = 'u32[]', space=smem, size = 0x4, offset = 0x4, fixed_abs, tag = 'smem constant byte address 0x4 - core index']
  #allocation1 [shape = 'u32[144,128]{1,0:T(1,128)}', space=vmem, size = 0x12000, scoped, tag = 'internal scratch']
  %s0 = inlined_call_operand.hbm [shape: f32[2,32], index: 0, kind: input, shape index: {}]
  %s1 = inlined_call_operand.hbm [shape: bf16[32,64], index: 1, kind: input, shape index: {}]
  %s2 = inlined_call_operand.vmem [shape: f32[1,64], index: 2, kind: input, shape index: {}]
  %s3 = inlined_call_operand.hbm [shape: f32[2,32], index: 3, kind: output, shape index: {0}]
  %s4 = inlined_call_operand.hbm [shape: f32[2,32], index: 4, kind: output, shape index: {1}]
  %5 = xla_tuple %s3, %s4
  %s6 = sld [smem:[#allocation0]]
  $region38: #{tpu_custom_call.1} parent=0
    _
  %s8 = ssub.s32 1, %s6
  %s9 = scalar_select 0, %s8, %s6
  $region1: #{tpu_custom_call.1} parent=0
    #allocation2 [shape = 'u8[1024]{0}', space=vmem, size = 0x400, scoped, tag = 'input window, operand 0, single buffered']
    #allocation3 [shape = 's32[1]{0}', space=sflag, size = 0x4, scoped, tag = 'scoped memory for tpu_custom_call.1']
    #allocation4 [shape = 's32[1]{0}', space=sflag, size = 0x4, scoped, tag = 'scoped memory for tpu_custom_call.1']
    #allocation5 [shape = 'u8[8192]{0}', space=vmem, size = 0x2000, scoped, tag = 'input window, operand 1, single buffered']
    #allocation6 [shape = 's32[1]{0}', space=sflag, size = 0x4, scoped, tag = 'scoped memory for tpu_custom_call.1']
    #allocation7 [shape = 'u8[1024]{0}', space=vmem, size = 0x400, scoped, tag = 'output window, operand 0, single buffered']
    #allocation8 [shape = 'u8[1024]{0}', space=vmem, size = 0x400, scoped, tag = 'output window, operand 1, single buffered']
    #allocation9 [shape = 's32[1]{0}', space=sflag, size = 0x4, scoped, tag = 'scoped memory for tpu_custom_call.1']
    %10 = vsyncpa [#allocation3], 0
    %11 = vsyncpa [#allocation6], 0
    %12 = vsyncpa [#allocation4], 0
    %13 = vsyncpa [#allocation9], 0
    // Predicated region
    $region2: #{tpu_custom_call.1} parent=1 // pred_check
      _
    $region3: #{tpu_custom_call.1} parent=1 // pred_check_branch
      %15 = sbr.rel (0) target = $region5
    $region4: #{tpu_custom_call.1} parent=1 // pred_region
      %s17 = ssub.s32 32, 32
      %18 = vsyncadd [#allocation3], %s17
      %s20 = sshll.u32 [#allocation2], 4
      %s21 = int_to_ptr.vmem [resolvable:$true] %s20
      %23 = dma.hbm_to_vmem [thread:$0]  %s0, 32, %s21, [#allocation3]
    $region5: #{tpu_custom_call.1} parent=1 // pred_fallthru
      _
    // Predicated region
    $region6: #{tpu_custom_call.1} parent=1 // pred_check
      _
    $region7: #{tpu_custom_call.1} parent=1 // pred_check_branch
      %25 = sbr.rel (0) target = $region9
    $region8: #{tpu_custom_call.1} parent=1 // pred_region
      %s27 = ssub.s32 256, 256
      %28 = vsyncadd [#allocation6], %s27
      %s29 = sshll.u32 [#allocation5], 4
      %s30 = int_to_ptr.vmem [resolvable:$true] %s29
      %35 = dma.hbm_to_vmem [thread:$0]  %s1, 256, %s30, [#allocation6], 64, 64, 4
    $region9: #{tpu_custom_call.1} parent=1 // pred_fallthru
      _
    // Predicated region
    $region10: #{tpu_custom_call.1} parent=1 // pred_check
      _
    $region11: #{tpu_custom_call.1} parent=1 // pred_check_branch
      %37 = sbr.rel (0) target = $region13
    $region12: #{tpu_custom_call.1} parent=1 // pred_region
      _
    $region13: #{tpu_custom_call.1} parent=1 // pred_fallthru
      _
    // Predicated region
    $region14: #{tpu_custom_call.1} parent=1 // pred_check
      _
    $region15: #{tpu_custom_call.1} parent=1 // pred_check_branch
      %39 = sbr.rel (0) target = $region17
    $region16: #{tpu_custom_call.1} parent=1 // pred_region
      %40 = dma.done [#allocation3], 32
    $region17: #{tpu_custom_call.1} parent=1 // pred_fallthru
      _
    // Predicated region
    $region18: #{tpu_custom_call.1} parent=1 // pred_check
      _
    $region19: #{tpu_custom_call.1} parent=1 // pred_check_branch
      %42 = sbr.rel (0) target = $region21
    $region20: #{tpu_custom_call.1} parent=1 // pred_region
      %43 = dma.done [#allocation6], 256
    $region21: #{tpu_custom_call.1} parent=1 // pred_fallthru
      _
    %v45 = vld [vmem:[#allocation2] sm:$0x3]
    %v46 = vxor.u32 %v45, 2147483648
    %v47 = vmul.f32 %v46, 1.442695
    %v48 = vpow.pop %v47
    %v49 = vadd.f32 %v48, 1.0
    %v50 = vrcp.pop %v49
    %v51 = vmul.f32 1.0, %v50
    %v52 = vmul.f32 %v45, %v51
    %v53 = vpack.c.bf16 %v52, %v52
    %v54 = vld [vmem:[#allocation5] sm:$0xf]
    %v55 = vld [vmem:[#allocation5 + $0x4] sm:$0xf]
    %v56 = vld [vmem:[#allocation5 + $0x8] sm:$0xf]
    %v57 = vld [vmem:[#allocation5 + $0xc] sm:$0xf]
    %v58 = vld [vmem:[%s2] sm:$0x1]
    %v60 = vlaneseq
    %v61 = vshrl.u32 %v60, 7
    %v62 = vsub.s32 0, %v61
    %v63 = vrot.slane %v58, %v62
    %v69 = vunpack.c.l.b16 %v54
    %v70 = vunpack.c.l.b16 %v55
    %v71 = vunpack.c.l.b16 %v56
    %v72 = vunpack.c.l.b16 %v57
    %v73 = vpack.c.b16 %v70, %v69
    %v74 = vpack.c.b16 %v72, %v71
    %vm77 = vcmask 261120
    %v79 = vsel %vm77, %v53, 0
    %81 = vmatprep.subr.bf16.mxu0 0
    %82 = vmatpush1.bf16.msra.mxu0 %v73
    %83 = vmatprep.subr.bf16.mxu0 0
    %84 = vmatpush1.bf16.msra.mxu0 %v74
    %85 = vmatprep.subr.bf16.mxu0 0
    %86 = vmatpush1.bf16.msra.mxu0 0
    %87 = vmatprep.subr.bf16.mxu0 0
    %88 = vmatpush1.bf16.msra.mxu0 0
    %89 = vmatprep.subr.bf16.mxu0 0
    %90 = vmatpush1.bf16.msra.mxu0 0
    %91 = vmatprep.subr.bf16.mxu0 0
    %92 = vmatpush1.bf16.msra.mxu0 0
    %93 = vmatprep.subr.bf16.mxu0 0
    %94 = vmatpush1.bf16.msra.mxu0 0
    %95 = vmatprep.subr.bf16.mxu0 0
    %96 = vmatpush1.bf16.msra.mxu0 0
    %97 = vmatprep.subr.bf16.mxu0 0
    %98 = vmatpush1.bf16.msra.mxu0 0
    %99 = vmatprep.subr.bf16.mxu0 0
    %100 = vmatpush1.bf16.msra.mxu0 0
    %101 = vmatprep.subr.bf16.mxu0 0
    %102 = vmatpush1.bf16.msra.mxu0 0
    %103 = vmatprep.subr.bf16.mxu0 0
    %104 = vmatpush1.bf16.msra.mxu0 0
    %105 = vmatprep.subr.bf16.mxu0 0
    %106 = vmatpush1.bf16.msra.mxu0 0
    %107 = vmatprep.subr.bf16.mxu0 0
    %108 = vmatpush1.bf16.msra.mxu0 0
    %109 = vmatprep.subr.bf16.mxu0 0
    %110 = vmatpush1.bf16.msra.mxu0 0
    %111 = vmatprep.subr.bf16.mxu0 0
    %112 = vmatpush1.bf16.msra.mxu0 0
    %113 = vmatprep.mubr.bf16.mxu0 0
    %114 = vmatmul.mubr.bf16.gmra.mrb[0].mxu0 %v79
    %v115 = vpop.f32.mrb[0].mxu0
    %v116 = vadd.f32 %v63, %v115
    %v117 = vpop.f32.mrb[0].mxu0
    %v118 = vpop.f32.mrb[0].mxu0
    %v119 = vpop.f32.mrb[0].mxu0
    %120 = vdwg.mxu0
    %vm121 = vcmask 254976
    %122 = vst.msk [vmem:[#allocation7] sm:$0x3] %vm121, %v116
    %v123 = vadd.f32 %v116, 1.0
    %125 = vrot.lane.b32.xlu0 %v123, 96
    %v126 = vpop.permute.xlu0 %125
    %128 = vst.msk [vmem:[#allocation8] sm:$0x3] %vm121, %v126
    // Predicated region
    $region22: #{tpu_custom_call.1} parent=1 // pred_check
      _
    $region23: #{tpu_custom_call.1} parent=1 // pred_check_branch
      %130 = sbr.rel (0) target = $region25
    $region24: #{tpu_custom_call.1} parent=1 // pred_region
      %s132 = ssub.s32 32, 32
      %133 = vsyncadd [#allocation4], %s132
      %s135 = sshll.u32 [#allocation7], 4
      %s136 = int_to_ptr.vmem [resolvable:$true] %s135
      %138 = dma.vmem_to_hbm [thread:$0]  %s136, 32, %s3, [#allocation4]
    $region25: #{tpu_custom_call.1} parent=1 // pred_fallthru
      _
    // Predicated region
    $region26: #{tpu_custom_call.1} parent=1 // pred_check
      _
    $region27: #{tpu_custom_call.1} parent=1 // pred_check_branch
      %140 = sbr.rel (0) target = $region29
    $region28: #{tpu_custom_call.1} parent=1 // pred_region
      %s142 = ssub.s32 32, 32
      %143 = vsyncadd [#allocation9], %s142
      %s145 = sshll.u32 [#allocation8], 4
      %s146 = int_to_ptr.vmem [resolvable:$true] %s145
      %148 = dma.vmem_to_hbm [thread:$0]  %s146, 32, %s4, [#allocation9]
    $region29: #{tpu_custom_call.1} parent=1 // pred_fallthru
      _
    // Predicated region
    $region30: #{tpu_custom_call.1} parent=1 // pred_check
      _
    $region31: #{tpu_custom_call.1} parent=1 // pred_check_branch
      %150 = sbr.rel (0) target = $region33
    $region32: #{tpu_custom_call.1} parent=1 // pred_region
      %151 = dma.done [#allocation4], 32
    $region33: #{tpu_custom_call.1} parent=1 // pred_fallthru
      _
    // Predicated region
    $region34: #{tpu_custom_call.1} parent=1 // pred_check
      _
    $region35: #{tpu_custom_call.1} parent=1 // pred_check_branch
      %153 = sbr.rel (0) target = $region37
    $region36: #{tpu_custom_call.1} parent=1 // pred_region
      %154 = dma.done [#allocation9], 32
    $region37: #{tpu_custom_call.1} parent=1 // pred_fallthru
      _
    %155 = vsyncpa [#allocation3], 1
    %156 = vsyncpa [#allocation6], 1
    %157 = vsyncpa [#allocation4], 1
    %158 = vsyncpa [#allocation9], 1

</llo_original>
